<compile_context>
chip_gen: v7x
topology: tpu7x:2x2x1
jax: 0.10.0
libtpu: 0.0.40
codegen_flags: <defaults>
</compile_context>

<pallas_src>
import functools

import jax
import jax.numpy as jnp
from jax.experimental import pallas as pl
from jax.experimental.pallas import tpu as pltpu


def _round_up(x, m):
    return (x + m - 1) // m * m


# -----------------------------------------------------------------------------
# Pallas kernels
# -----------------------------------------------------------------------------
def reduce_kernel(x_ref, sum_ref):
    """Accumulate per-row (= per (n,c)) spatial sums across the m grid axis.

    x_ref:   (tile_nc, tile_m) block of the (N*C, M) activation.
    sum_ref: (tile_nc, 1) resident accumulator (same block for every m step).
    """
    @pl.when(pl.program_id(1) == 0)
    def _init():
        sum_ref[...] = jnp.zeros_like(sum_ref)

    sum_ref[...] += jnp.sum(x_ref[...], axis=1, keepdims=True)


def se_mlp_kernel(sum_ref, w1_ref, b1_ref, w2_ref, b2_ref, gate_ref, *, inv_hw):
    """gate = sigmoid(W2 @ relu6(W1 @ mean + b1) + b2).

    Operands are zero-padded to MXU-native tiles in the host glue; the
    padding rows/cols stay zero through both matmuls and are sliced away
    outside the kernel.
    """
    mean = sum_ref[...] * inv_hw                                    # (Np, Cp)
    h = jnp.dot(mean, w1_ref[...], preferred_element_type=jnp.float32)
    h = jnp.clip(h + b1_ref[...], 0.0, 6.0)                         # ReLU6
    g = jnp.dot(h, w2_ref[...], preferred_element_type=jnp.float32)
    g = g + b2_ref[...]
    gate_ref[...] = 1.0 / (1.0 + jnp.exp(-g))                       # sigmoid


def scale_kernel(x_ref, gate_ref, o_ref):
    """out = x * gate; gate (tile_nc, 1) broadcast along the lane axis."""
    o_ref[...] = x_ref[...] * gate_ref[...]


# -----------------------------------------------------------------------------
# Host glue
# -----------------------------------------------------------------------------
_VMEM = pl.BlockSpec(memory_space=pltpu.MemorySpace.VMEM)

_TILE_M_CAP = 512     # lanes per streamed block (multiple of 128)
_TILE_NC_CAP = 256    # sublanes per streamed block (multiple of 8)


def cse_forward(input_tensor, params):
    """Forward pass of cSE, numerically matching the PyTorch module."""
    x = input_tensor.astype(jnp.float32)
    n, c, h, w = x.shape
    w1 = params["w1"]                  # (R, C, 1, 1)
    b1 = params["b1"]                  # (R,)
    w2 = params["w2"]                  # (C, R, 1, 1)
    b2 = params["b2"]                  # (C,)
    r = w1.shape[0]

    m = h * w
    nc = n * c

    # --- lane-dense (N*C, M) layout, zero-padded to tile multiples ----------
    tile_m = min(_round_up(m, 128), _TILE_M_CAP)
    mp = _round_up(m, tile_m)
    tile_nc = min(_round_up(nc, 8), _TILE_NC_CAP)
    ncp = _round_up(nc, tile_nc)

    xf = x.reshape(nc, m)                                   # free reshape
    xf = jnp.pad(xf, ((0, ncp - nc), (0, mp - m)))          # zeros: sum-safe

    grid = (ncp // tile_nc, mp // tile_m)

    # --- 1) per-(n,c) spatial sums (AdaptiveAvgPool2d numerator) ------------
    sums = pl.pallas_call(
        reduce_kernel,
        out_shape=jax.ShapeDtypeStruct((ncp, 1), jnp.float32),
        grid=grid,
        in_specs=[pl.BlockSpec((tile_nc, tile_m), lambda i, j: (i, j))],
        out_specs=pl.BlockSpec((tile_nc, 1), lambda i, j: (i, 0)),
        compiler_params=pltpu.CompilerParams(
            dimension_semantics=("parallel", "arbitrary")),
    )(xf)

    # --- 2) tiny SE-MLP on the pooled (N, C) vector --------------------------
    np_ = _round_up(n, 8)        # sublane-native rows
    cp_ = _round_up(c, 128)      # lane-native channel dim
    rp_ = _round_up(r, 128)      # lane-native reduced dim

    sums_nc = sums[:nc, 0].reshape(n, c)
    sums_p = jnp.zeros((np_, cp_), jnp.float32).at[:n, :c].set(sums_nc)
    w1t_p = jnp.zeros((cp_, rp_), jnp.float32).at[:c, :r].set(
        w1.reshape(r, c).T.astype(jnp.float32))
    b1_p = jnp.zeros((np_, rp_), jnp.float32).at[:, :r].set(
        b1.astype(jnp.float32)[None, :])
    w2t_p = jnp.zeros((rp_, cp_), jnp.float32).at[:r, :c].set(
        w2.reshape(c, r).T.astype(jnp.float32))
    b2_p = jnp.zeros((np_, cp_), jnp.float32).at[:, :c].set(
        b2.astype(jnp.float32)[None, :])

    gate_p = pl.pallas_call(
        functools.partial(se_mlp_kernel, inv_hw=1.0 / float(m)),
        out_shape=jax.ShapeDtypeStruct((np_, cp_), jnp.float32),
        in_specs=[_VMEM] * 5,
        out_specs=_VMEM,
    )(sums_p, w1t_p, b1_p, w2t_p, b2_p)

    gate = gate_p[:n, :c].reshape(nc, 1)                    # free reshape
    gate = jnp.pad(gate, ((0, ncp - nc), (0, 0)))

    # --- 3) out = input * gate, streamed over spatial tiles ------------------
    y = pl.pallas_call(
        scale_kernel,
        out_shape=jax.ShapeDtypeStruct((ncp, mp), jnp.float32),
        grid=grid,
        in_specs=[pl.BlockSpec((tile_nc, tile_m), lambda i, j: (i, j)),
                  pl.BlockSpec((tile_nc, 1), lambda i, j: (i, 0))],
        out_specs=pl.BlockSpec((tile_nc, tile_m), lambda i, j: (i, j)),
        compiler_params=pltpu.CompilerParams(
            dimension_semantics=("parallel", "parallel")),
    )(xf, gate)

    return y[:nc, :m].reshape(n, c, h, w)


# -----------------------------------------------------------------------------
# Parameters / reference / demo
# -----------------------------------------------------------------------------
def init_params(key, in_channels):
    reduced = 1 if in_channels // 2 == 0 else in_channels // 2
    k1, k2, k3, k4 = jax.random.split(key, 4)
    f32 = jnp.float32
    bound1 = 1.0 / (in_channels ** 0.5)
    bound2 = 1.0 / (reduced ** 0.5)
    return {
        "w1": jax.random.uniform(k1, (reduced, in_channels, 1, 1), f32, -bound1, bound1),
        "b1": jax.random.uniform(k2, (reduced,), f32, -bound1, bound1),
        "w2": jax.random.uniform(k3, (in_channels, reduced, 1, 1), f32, -bound2, bound2),
        "b2": jax.random.uniform(k4, (in_channels,), f32, -bound2, bound2),
    }


def cse_reference(x, params):
    """Pure-JAX reference (exact f32 accumulation) for validation."""
    mean = jnp.mean(x, axis=(2, 3))                              # (N, C)
    w1 = params["w1"].reshape(params["w1"].shape[0], -1)         # (R, C)
    w2 = params["w2"].reshape(params["w2"].shape[0], -1)         # (C, R)
    h = (mean[:, None, :] * w1[None, :, :]).sum(-1) + params["b1"][None, :]
    h = jnp.clip(h, 0.0, 6.0)
    g = (h[:, None, :] * w2[None, :, :]).sum(-1) + params["b2"][None, :]
    g = jax.nn.sigmoid(g)
    return x * g[:, :, None, None]


if __name__ == "__main__":
    key = jax.random.PRNGKey(0)
    k_x, k_p = jax.random.split(key)

    N, C, H, W = 2, 4, 32, 32          # M = 1024 -> two 512-lane tiles
    x = jax.random.normal(k_x, (N, C, H, W), jnp.float32)
    params = init_params(k_p, C)

    out = jax.jit(cse_forward)(x, params)
    out = jax.block_until_ready(out)

    assert out.shape == (N, C, H, W), out.shape
    assert out.dtype == jnp.float32
    assert bool(jnp.all(jnp.isfinite(out)))

    ref = cse_reference(x, params)
    max_err = float(jnp.max(jnp.abs(out - ref)))
    assert max_err < 1e-3, f"max abs error {max_err}"

    print("KERNEL_OK")
</pallas_src>

<mosaic_0001>
module attributes {stable_mosaic.version = 11 : i64} {
  func.func @reduce_kernel(%arg0: i32, %arg1: i32, %arg2: memref<8x512xf32, #tpu.memory_space<vmem>>, %arg3: memref<8x1xf32, #tpu.memory_space<vmem>>) attributes {dimension_semantics = [#tpu.dimension_semantics<parallel>, #tpu.dimension_semantics<arbitrary>], iteration_bounds = array<i64: 1, 2>, scalar_prefetch = 0 : i64, scratch_operands = 0 : i64, tpu.core_type = #tpu.core_type<tc>, window_params = [{transform_indices = @transform_0, window_bounds = array<i64: 8, 512>}, {transform_indices = @transform_1, window_bounds = array<i64: 8, 1>}]} {
    %c0_i32 = arith.constant 0 : i32
    %0 = arith.cmpi eq, %arg1, %c0_i32 : i32
    %1 = arith.extui %0 : i1 to i32
    %c0_i32_0 = arith.constant 0 : i32
    %2 = arith.cmpi ne, %1, %c0_i32_0 : i32
    scf.if %2 {
      %cst_6 = arith.constant 0.000000e+00 : f32
      %9 = vector.broadcast %cst_6 : f32 to vector<8x1xf32>
      %c0_7 = arith.constant 0 : index
      %c0_8 = arith.constant 0 : index
      %10 = vector.load %arg3[%c0_7, %c0_8] : memref<8x1xf32, #tpu.memory_space<vmem>>, vector<8x1xf32>
      tpu.vector_store %arg3[%c0_7, %c0_8], %9 {strides = array<i32>} : memref<8x1xf32, #tpu.memory_space<vmem>>, vector<8x1xf32>,
    } else {
    }
    %c0 = arith.constant 0 : index
    %c0_1 = arith.constant 0 : index
    %3 = vector.load %arg3[%c0, %c0_1] : memref<8x1xf32, #tpu.memory_space<vmem>>, vector<8x1xf32>
    %c0_2 = arith.constant 0 : index
    %c0_3 = arith.constant 0 : index
    %4 = vector.load %arg2[%c0_2, %c0_3] : memref<8x512xf32, #tpu.memory_space<vmem>>, vector<8x512xf32>
    %cst = arith.constant dense<0.000000e+00> : vector<8xf32>
    %5 = vector.multi_reduction <add>, %4, %cst [1] : vector<8x512xf32> to vector<8xf32>
    %6 = vector.shape_cast %5 : vector<8xf32> to vector<8x1xf32>
    %7 = arith.addf %3, %6 : vector<8x1xf32>
    %c0_4 = arith.constant 0 : index
    %c0_5 = arith.constant 0 : index
    %8 = vector.load %arg3[%c0_4, %c0_5] : memref<8x1xf32, #tpu.memory_space<vmem>>, vector<8x1xf32>
    tpu.vector_store %arg3[%c0_4, %c0_5], %7 {strides = array<i32>} : memref<8x1xf32, #tpu.memory_space<vmem>>, vector<8x1xf32>,
    return
  }
  func.func @transform_0(%arg0: i32, %arg1: i32) -> (i32, i32) {
    %c0_i32 = arith.constant 0 : i32
    return %arg0, %arg1 : i32, i32
  }
  func.func @transform_1(%arg0: i32, %arg1: i32) -> (i32, i32) {
    %c0_i32 = arith.constant 0 : i32
    %c0_i32_0 = arith.constant 0 : i32
    return %arg0, %c0_i32 : i32, i32
  }
}

module attributes {stable_mosaic.version = 11 : i64} {
  func.func @se_mlp_kernel(%arg0: memref<8x128xf32, #tpu.memory_space<vmem>>, %arg1: memref<128x128xf32, #tpu.memory_space<vmem>>, %arg2: memref<8x128xf32, #tpu.memory_space<vmem>>, %arg3: memref<128x128xf32, #tpu.memory_space<vmem>>, %arg4: memref<8x128xf32, #tpu.memory_space<vmem>>, %arg5: memref<8x128xf32, #tpu.memory_space<vmem>>) attributes {dimension_semantics = [], scalar_prefetch = 0 : i64, scratch_operands = 0 : i64, tpu.core_type = #tpu.core_type<tc>} {
    %c0 = arith.constant 0 : index
    %c0_0 = arith.constant 0 : index
    %0 = vector.load %arg0[%c0, %c0_0] : memref<8x128xf32, #tpu.memory_space<vmem>>, vector<8x128xf32>
    %cst = arith.constant 9.765625E-4 : f32
    %1 = vector.broadcast %cst : f32 to vector<8x128xf32>
    %2 = arith.mulf %0, %1 : vector<8x128xf32>
    %c0_1 = arith.constant 0 : index
    %c0_2 = arith.constant 0 : index
    %3 = vector.load %arg1[%c0_1, %c0_2] : memref<128x128xf32, #tpu.memory_space<vmem>>, vector<128x128xf32>
    %cst_3 = arith.constant dense<0.000000e+00> : vector<8x128xf32>
    %4 = tpu.matmul %2, %3, %cst_3 {dimension_numbers = #tpu.dot_dimension_numbers<[1], [0], [0], [1], [0, 0, 1, 1], [], []>} : vector<8x128xf32>, vector<128x128xf32>, vector<8x128xf32> -> vector<8x128xf32>
    %c0_4 = arith.constant 0 : index
    %c0_5 = arith.constant 0 : index
    %5 = vector.load %arg2[%c0_4, %c0_5] : memref<8x128xf32, #tpu.memory_space<vmem>>, vector<8x128xf32>
    %6 = arith.addf %4, %5 : vector<8x128xf32>
    %cst_6 = arith.constant 0.000000e+00 : f32
    %cst_7 = arith.constant 6.000000e+00 : f32
    %7 = vector.broadcast %cst_6 : f32 to vector<8x128xf32>
    %8 = arith.maximumf %7, %6 : vector<8x128xf32>
    %9 = vector.broadcast %cst_7 : f32 to vector<8x128xf32>
    %10 = arith.minimumf %9, %8 : vector<8x128xf32>
    %c0_8 = arith.constant 0 : index
    %c0_9 = arith.constant 0 : index
    %11 = vector.load %arg3[%c0_8, %c0_9] : memref<128x128xf32, #tpu.memory_space<vmem>>, vector<128x128xf32>
    %cst_10 = arith.constant dense<0.000000e+00> : vector<8x128xf32>
    %12 = tpu.matmul %10, %11, %cst_10 {dimension_numbers = #tpu.dot_dimension_numbers<[1], [0], [0], [1], [0, 0, 1, 1], [], []>} : vector<8x128xf32>, vector<128x128xf32>, vector<8x128xf32> -> vector<8x128xf32>
    %c0_11 = arith.constant 0 : index
    %c0_12 = arith.constant 0 : index
    %13 = vector.load %arg4[%c0_11, %c0_12] : memref<8x128xf32, #tpu.memory_space<vmem>>, vector<8x128xf32>
    %14 = arith.addf %12, %13 : vector<8x128xf32>
    %cst_13 = arith.constant 0.000000e+00 : f32
    %15 = vector.broadcast %cst_13 : f32 to vector<8x128xf32>
    %16 = arith.subf %15, %14 : vector<8x128xf32>
    %17 = math.exp %16 : vector<8x128xf32>
    %cst_14 = arith.constant 1.000000e+00 : f32
    %18 = vector.broadcast %cst_14 : f32 to vector<8x128xf32>
    %19 = arith.addf %18, %17 : vector<8x128xf32>
    %cst_15 = arith.constant 1.000000e+00 : f32
    %20 = vector.broadcast %cst_15 : f32 to vector<8x128xf32>
    %21 = arith.divf %20, %19 : vector<8x128xf32>
    %c0_16 = arith.constant 0 : index
    %c0_17 = arith.constant 0 : index
    %22 = vector.load %arg5[%c0_16, %c0_17] : memref<8x128xf32, #tpu.memory_space<vmem>>, vector<8x128xf32>
    tpu.vector_store %arg5[%c0_16, %c0_17], %21 {strides = array<i32>} : memref<8x128xf32, #tpu.memory_space<vmem>>, vector<8x128xf32>,
    return
  }
}

module attributes {stable_mosaic.version = 11 : i64} {
  func.func @scale_kernel(%arg0: i32, %arg1: i32, %arg2: memref<8x512xf32, #tpu.memory_space<vmem>>, %arg3: memref<8x1xf32, #tpu.memory_space<vmem>>, %arg4: memref<8x512xf32, #tpu.memory_space<vmem>>) attributes {dimension_semantics = [#tpu.dimension_semantics<parallel>, #tpu.dimension_semantics<parallel>], iteration_bounds = array<i64: 1, 2>, scalar_prefetch = 0 : i64, scratch_operands = 0 : i64, tpu.core_type = #tpu.core_type<tc>, window_params = [{transform_indices = @transform_0, window_bounds = array<i64: 8, 512>}, {transform_indices = @transform_1, window_bounds = array<i64: 8, 1>}, {transform_indices = @transform_2, window_bounds = array<i64: 8, 512>}]} {
    %c0 = arith.constant 0 : index
    %c0_0 = arith.constant 0 : index
    %0 = vector.load %arg2[%c0, %c0_0] : memref<8x512xf32, #tpu.memory_space<vmem>>, vector<8x512xf32>
    %c0_1 = arith.constant 0 : index
    %c0_2 = arith.constant 0 : index
    %1 = vector.load %arg3[%c0_1, %c0_2] : memref<8x1xf32, #tpu.memory_space<vmem>>, vector<8x1xf32>
    %2 = vector.broadcast %1 : vector<8x1xf32> to vector<8x512xf32>
    %3 = arith.mulf %0, %2 : vector<8x512xf32>
    %c0_3 = arith.constant 0 : index
    %c0_4 = arith.constant 0 : index
    %4 = vector.load %arg4[%c0_3, %c0_4] : memref<8x512xf32, #tpu.memory_space<vmem>>, vector<8x512xf32>
    tpu.vector_store %arg4[%c0_3, %c0_4], %3 {strides = array<i32>} : memref<8x512xf32, #tpu.memory_space<vmem>>, vector<8x512xf32>,
    return
  }
  func.func @transform_0(%arg0: i32, %arg1: i32) -> (i32, i32) {
    %c0_i32 = arith.constant 0 : i32
    return %arg0, %arg1 : i32, i32
  }
  func.func @transform_1(%arg0: i32, %arg1: i32) -> (i32, i32) {
    %c0_i32 = arith.constant 0 : i32
    %c0_i32_0 = arith.constant 0 : i32
    return %arg0, %c0_i32 : i32, i32
  }
  func.func @transform_2(%arg0: i32, %arg1: i32) -> (i32, i32) {
    %c0_i32 = arith.constant 0 : i32
    return %arg0, %arg1 : i32, i32
  }
}

</mosaic_0001>

<llo_original>
// kernel: cse_forward.3
$region0: #{cse_forward.3}
  #allocation0 [shape = 'u32[]', space=smem, size = 0x4, offset = 0x4, fixed_abs, tag = 'smem constant byte address 0x4 - core index']
  #allocation1 [shape = 'u32[144,128]{1,0:T(1,128)}', space=vmem, size = 0x12000, scoped, tag = 'internal scratch']
  %s0 = inlined_call_operand.vmem [shape: f32[8,1024], index: 0, kind: input, shape index: {}]
  %s1 = inlined_call_operand.vmem [shape: f32[8,1], index: 1, kind: output, shape index: {}]
  %s2 = sld [smem:[#allocation0]]
  $region41: #{cse_forward.3} parent=0
    _
  %s4 = ssub.s32 1, %s2
  %s5 = scalar_select 0, %s4, %s2
  loop: start=0, step=1, limit=4
  $region2: #{cse_forward.3} parent=0 // loop_pre_header
    _
  $region3: #{cse_forward.3} parent=0 // loop_header
    %s7 = sphi 0, %s11
    %p8 = scmp.ge.s32.totalorder %s7, 4
    %s14 = sphi 0, %s26
    %s15 = sphi 0, %s22
    %s16 = sphi 0, %s14
    %s17 = sphi 0, %s15
    %s18 = sphi 0, %s16
    %s19 = sphi 0, %s17
    %s31 = sphi 0, %s33
    %s34 = sphi 0, %s31
    %s35 = sphi 0, %s34
    %s51 = sphi 0, %s35
    %s57 = sphi 0, %s59
    %s60 = sphi 0, %s57
    %s61 = sphi 0, %s60
    %s77 = sphi 0, %s61
  $region4: #{cse_forward.3} parent=0 // loop_header_branch
    %10 = sbr.rel (%p8) target = $region8
  $region5: #{cse_forward.3} parent=0 // loop_body
    %s12 = ssub.s32 %s7, 1
    %s13 = ssub.s32 %s7, 2
    %s20 = sadd.s32 1, %s15
    %p21 = scmp.ge.s32.totalorder %s20, 2
    %s22 = scalar_select %p21, 0, %s20
    %s23 = sadd.s32 1, %s14
    %s24 = scalar_select %p21, %s23, %s14
    %p25 = scmp.ge.s32.totalorder %s24, 1
    %s26 = scalar_select %p25, 0, %s24
    %s27 = ssub.s32 %s14, %s26
    %s28 = ssub.s32 %s15, %s22
    %s29 = sor.u32 %s27, %s28
    %p30 = scmp.eq.s32.totalorder %s29, 0
    %s32 = sadd.s32 %s31, 1
    %s33 = scalar_select %p30, %s31, %s32
    %p36 = pneg %p30
    %p37 = scmp.eq.s32.totalorder %s7, 1
    %p38 = por %p36, %p37
    %p39 = scmp.ne.s32.totalorder %s31, %s34
    %p40 = scmp.eq.s32.totalorder %s7, 0
    %p41 = por %p39, %p40
    %p42 = scmp.ne.s32.totalorder %s31, %s34
    %p43 = scmp.eq.s32.totalorder %s12, 1
    %p44 = por %p42, %p43
    %p45 = scmp.ne.s32.totalorder %s34, %s35
    %p46 = scmp.eq.s32.totalorder %s12, 0
    %p47 = por %p45, %p46
    %p48 = scmp.ne.s32.totalorder %s34, %s35
    %p49 = scmp.eq.s32.totalorder %s13, 1
    %p50 = por %p48, %p49
    %p52 = scmp.ne.s32.totalorder %s35, %s51
    %p53 = scmp.eq.s32.totalorder %s13, 0
    %p54 = por %p52, %p53
    %s55 = ssub.s32 %s14, %s26
    %p56 = scmp.eq.s32.totalorder %s55, 0
    %s58 = sadd.s32 %s57, 1
    %s59 = scalar_select %p56, %s57, %s58
    %p62 = pneg %p56
    %p63 = scmp.eq.s32.totalorder %s7, 1
    %p64 = por %p62, %p63
    %p65 = scmp.ne.s32.totalorder %s57, %s60
    %p66 = scmp.eq.s32.totalorder %s7, 0
    %p67 = por %p65, %p66
    %p68 = scmp.ne.s32.totalorder %s57, %s60
    %p69 = scmp.eq.s32.totalorder %s12, 1
    %p70 = por %p68, %p69
    %p71 = scmp.ne.s32.totalorder %s60, %s61
    %p72 = scmp.eq.s32.totalorder %s12, 0
    %p73 = por %p71, %p72
    %p74 = scmp.ne.s32.totalorder %s60, %s61
    %p75 = scmp.eq.s32.totalorder %s13, 1
    %p76 = por %p74, %p75
    %p78 = scmp.ne.s32.totalorder %s61, %s77
    %p79 = scmp.eq.s32.totalorder %s13, 0
    %p80 = por %p78, %p79
    %p81 = scmp.le.s32.totalorder 1, %s7
    %p82 = scmp.lt.s32.totalorder %s7, 3
    %p83 = pnand %p81, %p82
    %p84 = pneg %p83
    // Predicated region
    $region9: #{cse_forward.3} parent=5 // pred_check
      _
    $region10: #{cse_forward.3} parent=5 // pred_check_branch
      %86 = sbr.rel (%p83) target = $region12
    $region11: #{cse_forward.3} parent=5 // pred_region
      %s87 = ssub.s32 %s7, 1
    $region12: #{cse_forward.3} parent=5 // pred_fallthru
      _
    %p88 = scmp.lt.s32.totalorder %s7, 2
    // Predicated region
    $region13: #{cse_forward.3} parent=5 // pred_check
      %p89 = pneg %p88
    $region14: #{cse_forward.3} parent=5 // pred_check_branch
      %91 = sbr.rel (%p89) target = $region16
    $region15: #{cse_forward.3} parent=5 // pred_region
      // Predicated region
      $region17: #{cse_forward.3} parent=15 // pred_check
        %p92 = pneg %p41
      $region18: #{cse_forward.3} parent=15 // pred_check_branch
        %94 = sbr.rel (%p92) target = $region20
      $region19: #{cse_forward.3} parent=15 // pred_region
        %s95 = smul.u32 4, %s15
        %p96 = scmp.lt.s32.totalorder %s14, 0
        %s97 = scalar_select %p96, %s14, 0
        %p98 = scmp.lt.s32.totalorder %s95, 7
        %s99 = scalar_select %p98, %s95, 7
        %s100 = smul.addr %s97, 8
        %s101 = sadd.s32 %s99, %s100
        %s102 = smul.addr %s101, 8
        %s103 = scalar_lea.vmem %s0, %s102
        %s104 = smul.u32 4, %s15
      $region20: #{cse_forward.3} parent=15 // pred_fallthru
        _
    $region16: #{cse_forward.3} parent=5 // pred_fallthru
      _
    %p105 = scmp.le.s32.totalorder 1, %s7
    %p106 = scmp.lt.s32.totalorder %s7, 3
    %p107 = pnand %p105, %p106
    %p108 = pneg %p107
    // Predicated region
    $region21: #{cse_forward.3} parent=5 // pred_check
      _
    $region22: #{cse_forward.3} parent=5 // pred_check_branch
      %110 = sbr.rel (%p107) target = $region24
    $region23: #{cse_forward.3} parent=5 // pred_region
      %s111 = ssub.s32 %s7, 1
      %s112 = smul.u32 4, %s17
      %p113 = scmp.lt.s32.totalorder %s16, 0
      %s114 = scalar_select %p113, %s16, 0
      %p115 = scmp.lt.s32.totalorder %s112, 7
      %s116 = scalar_select %p115, %s112, 7
      %s117 = smul.addr %s114, 8
      %s118 = sadd.s32 %s116, %s117
      %s119 = smul.addr %s118, 8
      %s120 = scalar_lea.vmem %s0, %s119
      %p121 = pneg %p47
      %p122 = pneg %p44
      %p123 = pneg %p73
      %p124 = pneg %p70
      %p125 = scmp.lt.s32.totalorder %s16, 0
      %s126 = scalar_select %p125, %s16, 0
      %s127 = smul.addr %s126, 8
      %s128 = scalar_lea.vmem %s1, %s127
      %s129 = smul.u32 4, %s17
      %p130 = scmp.lt.s32.totalorder %s16, 0
      %s131 = scalar_select %p130, %s16, 0
      %p132 = scmp.lt.s32.totalorder %s129, 7
      %s133 = scalar_select %p132, %s129, 7
      %s134 = smul.addr %s131, 8
      %s135 = sadd.s32 %s133, %s134
      %s136 = smul.addr %s135, 8
      %s137 = scalar_lea.vmem %s0, %s136
      %s138 = smul.u32 4, %s17
      %p139 = scmp.lt.s32.totalorder %s16, 0
      %s140 = scalar_select %p139, %s16, 0
      %s141 = smul.addr %s140, 8
      %s142 = scalar_lea.vmem %s1, %s141
      %p143 = scmp.eq.s32.totalorder %s17, 0
      // Predicated region
      $region25: #{cse_forward.3} parent=23 // pred_check
        %p144 = pneg %p143
      $region26: #{cse_forward.3} parent=23 // pred_check_branch
        %146 = sbr.rel (%p144) target = $region28
      $region27: #{cse_forward.3} parent=23 // pred_region
        %vm147 = vcmask 7168
        %148 = vst.msk [vmem:[%s142] sm:$0xff] %vm147, 0.0
      $region28: #{cse_forward.3} parent=23 // pred_fallthru
        _
      %v149 = vld [vmem:[%s142] sm:$0xff]
      %v150 = vld [vmem:[%s137] sm:$0xff]
      %v151 = vld [vmem:[%s137 + $0x8] sm:$0xff]
      %v152 = vld [vmem:[%s137 + $0x10] sm:$0xff]
      %v153 = vld [vmem:[%s137 + $0x18] sm:$0xff]
      %v154 = vadd.f32 %v150, %v151
      %v155 = vadd.f32 %v154, %v152
      %v156 = vadd.f32 %v155, %v153
      %157 = vadd.xlane.f32.xlu0 %v156
      %v158 = vpop.xlane.xlu0 %157
      %v159 = vadd.f32 %v149, %v158
      %vm160 = vcmask 7168
      %161 = vst.msk [vmem:[%s142] sm:$0xff] %vm160, %v159
      %p162 = scmp.lt.s32.totalorder %s16, 0
      %s163 = scalar_select %p162, %s16, 0
      %s164 = smul.addr %s163, 8
      %s165 = scalar_lea.vmem %s1, %s164
      // Predicated region
      $region29: #{cse_forward.3} parent=23 // pred_check
        %p166 = pneg %p70
      $region30: #{cse_forward.3} parent=23 // pred_check_branch
        %168 = sbr.rel (%p166) target = $region32
      $region31: #{cse_forward.3} parent=23 // pred_region
        _
      $region32: #{cse_forward.3} parent=23 // pred_fallthru
        _
      // Predicated region
      $region33: #{cse_forward.3} parent=23 // pred_check
        %p169 = pneg %p70
      $region34: #{cse_forward.3} parent=23 // pred_check_branch
        %171 = sbr.rel (%p169) target = $region36
      $region35: #{cse_forward.3} parent=23 // pred_region
        %p172 = scmp.lt.s32.totalorder %s16, 0
        %s173 = scalar_select %p172, %s16, 0
        %s174 = smul.addr %s173, 8
        %s175 = scalar_lea.vmem %s1, %s174
      $region36: #{cse_forward.3} parent=23 // pred_fallthru
        _
    $region24: #{cse_forward.3} parent=5 // pred_fallthru
      _
    %p176 = scmp.le.s32.totalorder 2, %s7
    // Predicated region
    $region37: #{cse_forward.3} parent=5 // pred_check
      %p177 = pneg %p176
    $region38: #{cse_forward.3} parent=5 // pred_check_branch
      %179 = sbr.rel (%p177) target = $region40
    $region39: #{cse_forward.3} parent=5 // pred_region
      %s180 = ssub.s32 %s7, 2
    $region40: #{cse_forward.3} parent=5 // pred_fallthru
      _
  $region6: #{cse_forward.3} parent=0 // loop_footer
    %s11 = sadd.s32 1, %s7
  $region7: #{cse_forward.3} parent=0 // loop_footer_branch
    %6 = sbr.rel target = $region3
  $region8: #{cse_forward.3} parent=0 // loop_exit
    _

// kernel: cse_forward.4
$region0: #{cse_forward.4}
  #allocation0 [shape = 'u32[]', space=smem, size = 0x4, offset = 0x4, fixed_abs, tag = 'smem constant byte address 0x4 - core index']
  #allocation1 [shape = 'u32[144,128]{1,0:T(1,128)}', space=vmem, size = 0x12000, scoped, tag = 'internal scratch']
  %s0 = inlined_call_operand.vmem [shape: f32[8,128], index: 0, kind: input, shape index: {}]
  %s1 = inlined_call_operand.vmem [shape: f32[128,128], index: 1, kind: input, shape index: {}]
  %s2 = inlined_call_operand.vmem [shape: f32[8,128], index: 2, kind: input, shape index: {}]
  %s3 = inlined_call_operand.vmem [shape: f32[128,128], index: 3, kind: input, shape index: {}]
  %s4 = inlined_call_operand.vmem [shape: f32[8,128], index: 4, kind: input, shape index: {}]
  %s5 = inlined_call_operand.vmem [shape: f32[8,128], index: 5, kind: output, shape index: {}]
  %s6 = sld [smem:[#allocation0]]
  $region30: #{cse_forward.4} parent=0
    _
  %s8 = ssub.s32 1, %s6
  %s9 = scalar_select 0, %s8, %s6
  // Predicated region
  $region2: #{cse_forward.4} parent=0 // pred_check
    _
  $region3: #{cse_forward.4} parent=0 // pred_check_branch
    %11 = sbr.rel (0) target = $region5
  $region4: #{cse_forward.4} parent=0 // pred_region
    _
  $region5: #{cse_forward.4} parent=0 // pred_fallthru
    _
  // Predicated region
  $region6: #{cse_forward.4} parent=0 // pred_check
    _
  $region7: #{cse_forward.4} parent=0 // pred_check_branch
    %13 = sbr.rel (0) target = $region9
  $region8: #{cse_forward.4} parent=0 // pred_region
    _
  $region9: #{cse_forward.4} parent=0 // pred_fallthru
    _
  // Predicated region
  $region10: #{cse_forward.4} parent=0 // pred_check
    _
  $region11: #{cse_forward.4} parent=0 // pred_check_branch
    %15 = sbr.rel (0) target = $region13
  $region12: #{cse_forward.4} parent=0 // pred_region
    _
  $region13: #{cse_forward.4} parent=0 // pred_fallthru
    _
  // Predicated region
  $region14: #{cse_forward.4} parent=0 // pred_check
    _
  $region15: #{cse_forward.4} parent=0 // pred_check_branch
    %17 = sbr.rel (0) target = $region17
  $region16: #{cse_forward.4} parent=0 // pred_region
    _
  $region17: #{cse_forward.4} parent=0 // pred_fallthru
    _
  // Predicated region
  $region18: #{cse_forward.4} parent=0 // pred_check
    _
  $region19: #{cse_forward.4} parent=0 // pred_check_branch
    %19 = sbr.rel (0) target = $region21
  $region20: #{cse_forward.4} parent=0 // pred_region
    _
  $region21: #{cse_forward.4} parent=0 // pred_fallthru
    _
  %v20 = vld [vmem:[%s0] sm:$0xff]
  %v21 = vmul.f32 %v20, 0.0009765625
  %v22 = vld [vmem:[%s1] sm:$0xff]
  %v23 = vld [vmem:[%s1 + $0x8] sm:$0xff]
  %v24 = vld [vmem:[%s1 + $0x10] sm:$0xff]
  %v25 = vld [vmem:[%s1 + $0x18] sm:$0xff]
  %v26 = vld [vmem:[%s1 + $0x20] sm:$0xff]
  %v27 = vld [vmem:[%s1 + $0x28] sm:$0xff]
  %v28 = vld [vmem:[%s1 + $0x30] sm:$0xff]
  %v29 = vld [vmem:[%s1 + $0x38] sm:$0xff]
  %v30 = vld [vmem:[%s1 + $0x40] sm:$0xff]
  %v31 = vld [vmem:[%s1 + $0x48] sm:$0xff]
  %v32 = vld [vmem:[%s1 + $0x50] sm:$0xff]
  %v33 = vld [vmem:[%s1 + $0x58] sm:$0xff]
  %v34 = vld [vmem:[%s1 + $0x60] sm:$0xff]
  %v35 = vld [vmem:[%s1 + $0x68] sm:$0xff]
  %v36 = vld [vmem:[%s1 + $0x70] sm:$0xff]
  %v37 = vld [vmem:[%s1 + $0x78] sm:$0xff]
  %v38 = vld [vmem:[%s2] sm:$0xff]
  %39 = vmatprep.subr.mxu0 0.0
  %40 = vmatpush1.msra.mxu0 %v22
  %41 = vmatprep.subr.mxu0 0.0
  %42 = vmatpush1.msra.mxu0 %v23
  %43 = vmatprep.subr.mxu0 0.0
  %44 = vmatpush1.msra.mxu0 %v24
  %45 = vmatprep.subr.mxu0 0.0
  %46 = vmatpush1.msra.mxu0 %v25
  %47 = vmatprep.subr.mxu0 0.0
  %48 = vmatpush1.msra.mxu0 %v26
  %49 = vmatprep.subr.mxu0 0.0
  %50 = vmatpush1.msra.mxu0 %v27
  %51 = vmatprep.subr.mxu0 0.0
  %52 = vmatpush1.msra.mxu0 %v28
  %53 = vmatprep.subr.mxu0 0.0
  %54 = vmatpush1.msra.mxu0 %v29
  %55 = vmatprep.subr.mxu0 0.0
  %56 = vmatpush1.msra.mxu0 %v30
  %57 = vmatprep.subr.mxu0 0.0
  %58 = vmatpush1.msra.mxu0 %v31
  %59 = vmatprep.subr.mxu0 0.0
  %60 = vmatpush1.msra.mxu0 %v32
  %61 = vmatprep.subr.mxu0 0.0
  %62 = vmatpush1.msra.mxu0 %v33
  %63 = vmatprep.subr.mxu0 0.0
  %64 = vmatpush1.msra.mxu0 %v34
  %65 = vmatprep.subr.mxu0 0.0
  %66 = vmatpush1.msra.mxu0 %v35
  %67 = vmatprep.subr.mxu0 0.0
  %68 = vmatpush1.msra.mxu0 %v36
  %69 = vmatprep.subr.mxu0 0.0
  %70 = vmatpush1.msra.mxu0 %v37
  %71 = vmatprep.subr.mxu0 0.0
  %72 = vmatpush1.msra.mxu0 0.0
  %73 = vmatprep.subr.mxu0 0.0
  %74 = vmatpush1.msra.mxu0 0.0
  %75 = vmatprep.subr.mxu0 0.0
  %76 = vmatpush1.msra.mxu0 0.0
  %77 = vmatprep.subr.mxu0 0.0
  %78 = vmatpush1.msra.mxu0 0.0
  %79 = vmatprep.subr.mxu0 0.0
  %80 = vmatpush1.msra.mxu0 0.0
  %81 = vmatprep.subr.mxu0 0.0
  %82 = vmatpush1.msra.mxu0 0.0
  %83 = vmatprep.subr.mxu0 0.0
  %84 = vmatpush1.msra.mxu0 0.0
  %85 = vmatprep.subr.mxu0 0.0
  %86 = vmatpush1.msra.mxu0 0.0
  %87 = vmatprep.subr.mxu0 0.0
  %88 = vmatpush1.msra.mxu0 0.0
  %89 = vmatprep.subr.mxu0 0.0
  %90 = vmatpush1.msra.mxu0 0.0
  %91 = vmatprep.subr.mxu0 0.0
  %92 = vmatpush1.msra.mxu0 0.0
  %93 = vmatprep.subr.mxu0 0.0
  %94 = vmatpush1.msra.mxu0 0.0
  %95 = vmatprep.subr.mxu0 0.0
  %96 = vmatpush1.msra.mxu0 0.0
  %97 = vmatprep.subr.mxu0 0.0
  %98 = vmatpush1.msra.mxu0 0.0
  %99 = vmatprep.subr.mxu0 0.0
  %100 = vmatpush1.msra.mxu0 0.0
  %101 = vmatprep.subr.mxu0 0.0
  %102 = vmatpush1.msra.mxu0 0.0
  %103 = vmatprep.mubr.f32.mxu0 0.0
  %104 = vmatmul.mubr.f32.gmra.mrb[0].mxu0 %v21
  %v105 = vpop.f32.mrb[0].mxu0
  %v106 = vadd.f32 %v38, %v105
  %v107 = vpop.f32.mrb[0].mxu0
  %108 = vdwg.mxu0
  %v109 = vmax.f32 %v106, 0.0
  %v110 = vmin.f32 %v109, 6.0
  %v111 = vld [vmem:[%s3] sm:$0xff]
  %v112 = vld [vmem:[%s3 + $0x8] sm:$0xff]
  %v113 = vld [vmem:[%s3 + $0x10] sm:$0xff]
  %v114 = vld [vmem:[%s3 + $0x18] sm:$0xff]
  %v115 = vld [vmem:[%s3 + $0x20] sm:$0xff]
  %v116 = vld [vmem:[%s3 + $0x28] sm:$0xff]
  %v117 = vld [vmem:[%s3 + $0x30] sm:$0xff]
  %v118 = vld [vmem:[%s3 + $0x38] sm:$0xff]
  %v119 = vld [vmem:[%s3 + $0x40] sm:$0xff]
  %v120 = vld [vmem:[%s3 + $0x48] sm:$0xff]
  %v121 = vld [vmem:[%s3 + $0x50] sm:$0xff]
  %v122 = vld [vmem:[%s3 + $0x58] sm:$0xff]
  %v123 = vld [vmem:[%s3 + $0x60] sm:$0xff]
  %v124 = vld [vmem:[%s3 + $0x68] sm:$0xff]
  %v125 = vld [vmem:[%s3 + $0x70] sm:$0xff]
  %v126 = vld [vmem:[%s3 + $0x78] sm:$0xff]
  %v127 = vld [vmem:[%s4] sm:$0xff]
  %128 = vmatprep.subr.mxu0 0.0
  %129 = vmatpush1.msra.mxu0 %v111
  %130 = vmatprep.subr.mxu0 0.0
  %131 = vmatpush1.msra.mxu0 %v112
  %132 = vmatprep.subr.mxu0 0.0
  %133 = vmatpush1.msra.mxu0 %v113
  %134 = vmatprep.subr.mxu0 0.0
  %135 = vmatpush1.msra.mxu0 %v114
  %136 = vmatprep.subr.mxu0 0.0
  %137 = vmatpush1.msra.mxu0 %v115
  %138 = vmatprep.subr.mxu0 0.0
  %139 = vmatpush1.msra.mxu0 %v116
  %140 = vmatprep.subr.mxu0 0.0
  %141 = vmatpush1.msra.mxu0 %v117
  %142 = vmatprep.subr.mxu0 0.0
  %143 = vmatpush1.msra.mxu0 %v118
  %144 = vmatprep.subr.mxu0 0.0
  %145 = vmatpush1.msra.mxu0 %v119
  %146 = vmatprep.subr.mxu0 0.0
  %147 = vmatpush1.msra.mxu0 %v120
  %148 = vmatprep.subr.mxu0 0.0
  %149 = vmatpush1.msra.mxu0 %v121
  %150 = vmatprep.subr.mxu0 0.0
  %151 = vmatpush1.msra.mxu0 %v122
  %152 = vmatprep.subr.mxu0 0.0
  %153 = vmatpush1.msra.mxu0 %v123
  %154 = vmatprep.subr.mxu0 0.0
  %155 = vmatpush1.msra.mxu0 %v124
  %156 = vmatprep.subr.mxu0 0.0
  %157 = vmatpush1.msra.mxu0 %v125
  %158 = vmatprep.subr.mxu0 0.0
  %159 = vmatpush1.msra.mxu0 %v126
  %160 = vmatprep.subr.mxu0 0.0
  %161 = vmatpush1.msra.mxu0 0.0
  %162 = vmatprep.subr.mxu0 0.0
  %163 = vmatpush1.msra.mxu0 0.0
  %164 = vmatprep.subr.mxu0 0.0
  %165 = vmatpush1.msra.mxu0 0.0
  %166 = vmatprep.subr.mxu0 0.0
  %167 = vmatpush1.msra.mxu0 0.0
  %168 = vmatprep.subr.mxu0 0.0
  %169 = vmatpush1.msra.mxu0 0.0
  %170 = vmatprep.subr.mxu0 0.0
  %171 = vmatpush1.msra.mxu0 0.0
  %172 = vmatprep.subr.mxu0 0.0
  %173 = vmatpush1.msra.mxu0 0.0
  %174 = vmatprep.subr.mxu0 0.0
  %175 = vmatpush1.msra.mxu0 0.0
  %176 = vmatprep.subr.mxu0 0.0
  %177 = vmatpush1.msra.mxu0 0.0
  %178 = vmatprep.subr.mxu0 0.0
  %179 = vmatpush1.msra.mxu0 0.0
  %180 = vmatprep.subr.mxu0 0.0
  %181 = vmatpush1.msra.mxu0 0.0
  %182 = vmatprep.subr.mxu0 0.0
  %183 = vmatpush1.msra.mxu0 0.0
  %184 = vmatprep.subr.mxu0 0.0
  %185 = vmatpush1.msra.mxu0 0.0
  %186 = vmatprep.subr.mxu0 0.0
  %187 = vmatpush1.msra.mxu0 0.0
  %188 = vmatprep.subr.mxu0 0.0
  %189 = vmatpush1.msra.mxu0 0.0
  %190 = vmatprep.subr.mxu0 0.0
  %191 = vmatpush1.msra.mxu0 0.0
  %192 = vmatprep.mubr.f32.mxu0 0.0
  %193 = vmatmul.mubr.f32.gmra.mrb[0].mxu0 %v110
  %v194 = vpop.f32.mrb[0].mxu0
  %v195 = vadd.f32 %v127, %v194
  %v196 = vpop.f32.mrb[0].mxu0
  %197 = vdwg.mxu0
  %v198 = vsub.f32 0.0, %v195
  %v199 = vmul.f32 %v198, 1.442695
  %v200 = vpow.pop %v199
  %v201 = vadd.f32 %v200, 1.0
  %v202 = vrcp.pop %v201
  %v203 = vmul.f32 1.0, %v202
  %204 = vst [vmem:[%s5] sm:$0xff] %v203
  // Predicated region
  $region22: #{cse_forward.4} parent=0 // pred_check
    _
  $region23: #{cse_forward.4} parent=0 // pred_check_branch
    %206 = sbr.rel (0) target = $region25
  $region24: #{cse_forward.4} parent=0 // pred_region
    _
  $region25: #{cse_forward.4} parent=0 // pred_fallthru
    _
  // Predicated region
  $region26: #{cse_forward.4} parent=0 // pred_check
    _
  $region27: #{cse_forward.4} parent=0 // pred_check_branch
    %208 = sbr.rel (0) target = $region29
  $region28: #{cse_forward.4} parent=0 // pred_region
    _
  $region29: #{cse_forward.4} parent=0 // pred_fallthru
    _

// kernel: cse_forward.5
$region0: #{cse_forward.5}
  #allocation0 [shape = 'u32[]', space=smem, size = 0x4, offset = 0x4, fixed_abs, tag = 'smem constant byte address 0x4 - core index']
  #allocation1 [shape = 'u32[144,128]{1,0:T(1,128)}', space=vmem, size = 0x12000, scoped, tag = 'internal scratch']
  %s0 = inlined_call_operand.vmem [shape: f32[8,1024], index: 0, kind: input, shape index: {}]
  %s1 = inlined_call_operand.vmem [shape: f32[8,1], index: 1, kind: input, shape index: {}]
  %s2 = inlined_call_operand.vmem [shape: f32[8,1024], index: 2, kind: output, shape index: {}]
  %s3 = sld [smem:[#allocation0]]
  $region41: #{cse_forward.5} parent=0
    _
  %s5 = ssub.s32 1, %s3
  %s6 = scalar_select 0, %s5, %s3
  loop: start=0, step=1, limit=4
  $region2: #{cse_forward.5} parent=0 // loop_pre_header
    _
  $region3: #{cse_forward.5} parent=0 // loop_header
    %s8 = sphi 0, %s12
    %p9 = scmp.ge.s32.totalorder %s8, 4
    %s15 = sphi 0, %s27
    %s16 = sphi 0, %s23
    %s17 = sphi 0, %s15
    %s18 = sphi 0, %s16
    %s19 = sphi 0, %s17
    %s20 = sphi 0, %s18
    %s32 = sphi 0, %s34
    %s35 = sphi 0, %s32
    %s36 = sphi 0, %s35
    %s52 = sphi 0, %s36
    %s58 = sphi 0, %s60
    %s61 = sphi 0, %s58
    %s62 = sphi 0, %s61
    %s78 = sphi 0, %s62
    %s86 = sphi 0, %s88
    %s89 = sphi 0, %s86
    %s90 = sphi 0, %s89
    %s106 = sphi 0, %s90
  $region4: #{cse_forward.5} parent=0 // loop_header_branch
    %11 = sbr.rel (%p9) target = $region8
  $region5: #{cse_forward.5} parent=0 // loop_body
    %s13 = ssub.s32 %s8, 1
    %s14 = ssub.s32 %s8, 2
    %s21 = sadd.s32 1, %s16
    %p22 = scmp.ge.s32.totalorder %s21, 2
    %s23 = scalar_select %p22, 0, %s21
    %s24 = sadd.s32 1, %s15
    %s25 = scalar_select %p22, %s24, %s15
    %p26 = scmp.ge.s32.totalorder %s25, 1
    %s27 = scalar_select %p26, 0, %s25
    %s28 = ssub.s32 %s15, %s27
    %s29 = ssub.s32 %s16, %s23
    %s30 = sor.u32 %s28, %s29
    %p31 = scmp.eq.s32.totalorder %s30, 0
    %s33 = sadd.s32 %s32, 1
    %s34 = scalar_select %p31, %s32, %s33
    %p37 = pneg %p31
    %p38 = scmp.eq.s32.totalorder %s8, 1
    %p39 = por %p37, %p38
    %p40 = scmp.ne.s32.totalorder %s32, %s35
    %p41 = scmp.eq.s32.totalorder %s8, 0
    %p42 = por %p40, %p41
    %p43 = scmp.ne.s32.totalorder %s32, %s35
    %p44 = scmp.eq.s32.totalorder %s13, 1
    %p45 = por %p43, %p44
    %p46 = scmp.ne.s32.totalorder %s35, %s36
    %p47 = scmp.eq.s32.totalorder %s13, 0
    %p48 = por %p46, %p47
    %p49 = scmp.ne.s32.totalorder %s35, %s36
    %p50 = scmp.eq.s32.totalorder %s14, 1
    %p51 = por %p49, %p50
    %p53 = scmp.ne.s32.totalorder %s36, %s52
    %p54 = scmp.eq.s32.totalorder %s14, 0
    %p55 = por %p53, %p54
    %s56 = ssub.s32 %s15, %s27
    %p57 = scmp.eq.s32.totalorder %s56, 0
    %s59 = sadd.s32 %s58, 1
    %s60 = scalar_select %p57, %s58, %s59
    %p63 = pneg %p57
    %p64 = scmp.eq.s32.totalorder %s8, 1
    %p65 = por %p63, %p64
    %p66 = scmp.ne.s32.totalorder %s58, %s61
    %p67 = scmp.eq.s32.totalorder %s8, 0
    %p68 = por %p66, %p67
    %p69 = scmp.ne.s32.totalorder %s58, %s61
    %p70 = scmp.eq.s32.totalorder %s13, 1
    %p71 = por %p69, %p70
    %p72 = scmp.ne.s32.totalorder %s61, %s62
    %p73 = scmp.eq.s32.totalorder %s13, 0
    %p74 = por %p72, %p73
    %p75 = scmp.ne.s32.totalorder %s61, %s62
    %p76 = scmp.eq.s32.totalorder %s14, 1
    %p77 = por %p75, %p76
    %p79 = scmp.ne.s32.totalorder %s62, %s78
    %p80 = scmp.eq.s32.totalorder %s14, 0
    %p81 = por %p79, %p80
    %s82 = ssub.s32 %s15, %s27
    %s83 = ssub.s32 %s16, %s23
    %s84 = sor.u32 %s82, %s83
    %p85 = scmp.eq.s32.totalorder %s84, 0
    %s87 = sadd.s32 %s86, 1
    %s88 = scalar_select %p85, %s86, %s87
    %p91 = pneg %p85
    %p92 = scmp.eq.s32.totalorder %s8, 1
    %p93 = por %p91, %p92
    %p94 = scmp.ne.s32.totalorder %s86, %s89
    %p95 = scmp.eq.s32.totalorder %s8, 0
    %p96 = por %p94, %p95
    %p97 = scmp.ne.s32.totalorder %s86, %s89
    %p98 = scmp.eq.s32.totalorder %s13, 1
    %p99 = por %p97, %p98
    %p100 = scmp.ne.s32.totalorder %s89, %s90
    %p101 = scmp.eq.s32.totalorder %s13, 0
    %p102 = por %p100, %p101
    %p103 = scmp.ne.s32.totalorder %s89, %s90
    %p104 = scmp.eq.s32.totalorder %s14, 1
    %p105 = por %p103, %p104
    %p107 = scmp.ne.s32.totalorder %s90, %s106
    %p108 = scmp.eq.s32.totalorder %s14, 0
    %p109 = por %p107, %p108
    %p110 = scmp.le.s32.totalorder 1, %s8
    %p111 = scmp.lt.s32.totalorder %s8, 3
    %p112 = pnand %p110, %p111
    %p113 = pneg %p112
    // Predicated region
    $region9: #{cse_forward.5} parent=5 // pred_check
      _
    $region10: #{cse_forward.5} parent=5 // pred_check_branch
      %115 = sbr.rel (%p112) target = $region12
    $region11: #{cse_forward.5} parent=5 // pred_region
      %s116 = ssub.s32 %s8, 1
      // Predicated region
      $region13: #{cse_forward.5} parent=11 // pred_check
        %p117 = pneg %p74
      $region14: #{cse_forward.5} parent=11 // pred_check_branch
        %119 = sbr.rel (%p117) target = $region16
      $region15: #{cse_forward.5} parent=11 // pred_region
        %p120 = scmp.lt.s32.totalorder %s17, 0
        %s121 = scalar_select %p120, %s17, 0
        %s122 = smul.addr %s121, 8
        %s123 = scalar_lea.vmem %s1, %s122
      $region16: #{cse_forward.5} parent=11 // pred_fallthru
        _
    $region12: #{cse_forward.5} parent=5 // pred_fallthru
      _
    %p124 = scmp.lt.s32.totalorder %s8, 2
    // Predicated region
    $region17: #{cse_forward.5} parent=5 // pred_check
      %p125 = pneg %p124
    $region18: #{cse_forward.5} parent=5 // pred_check_branch
      %127 = sbr.rel (%p125) target = $region20
    $region19: #{cse_forward.5} parent=5 // pred_region
      // Predicated region
      $region21: #{cse_forward.5} parent=19 // pred_check
        %p128 = pneg %p42
      $region22: #{cse_forward.5} parent=19 // pred_check_branch
        %130 = sbr.rel (%p128) target = $region24
      $region23: #{cse_forward.5} parent=19 // pred_region
        %s131 = smul.u32 4, %s16
        %p132 = scmp.lt.s32.totalorder %s15, 0
        %s133 = scalar_select %p132, %s15, 0
        %p134 = scmp.lt.s32.totalorder %s131, 7
        %s135 = scalar_select %p134, %s131, 7
        %s136 = smul.addr %s133, 8
        %s137 = sadd.s32 %s135, %s136
        %s138 = smul.addr %s137, 8
        %s139 = scalar_lea.vmem %s0, %s138
        %s140 = smul.u32 4, %s16
      $region24: #{cse_forward.5} parent=19 // pred_fallthru
        _
    $region20: #{cse_forward.5} parent=5 // pred_fallthru
      _
    %p141 = scmp.le.s32.totalorder 1, %s8
    %p142 = scmp.lt.s32.totalorder %s8, 3
    %p143 = pnand %p141, %p142
    %p144 = pneg %p143
    // Predicated region
    $region25: #{cse_forward.5} parent=5 // pred_check
      _
    $region26: #{cse_forward.5} parent=5 // pred_check_branch
      %146 = sbr.rel (%p143) target = $region28
    $region27: #{cse_forward.5} parent=5 // pred_region
      %s147 = ssub.s32 %s8, 1
      %s148 = smul.u32 4, %s18
      %p149 = scmp.lt.s32.totalorder %s17, 0
      %s150 = scalar_select %p149, %s17, 0
      %p151 = scmp.lt.s32.totalorder %s148, 7
      %s152 = scalar_select %p151, %s148, 7
      %s153 = smul.addr %s150, 8
      %s154 = sadd.s32 %s152, %s153
      %s155 = smul.addr %s154, 8
      %s156 = scalar_lea.vmem %s0, %s155
      %p157 = pneg %p48
      %p158 = pneg %p45
      %p159 = scmp.lt.s32.totalorder %s17, 0
      %s160 = scalar_select %p159, %s17, 0
      %s161 = smul.addr %s160, 8
      %s162 = scalar_lea.vmem %s1, %s161
      %p163 = pneg %p74
      %p164 = pneg %p71
      %p165 = pneg %p102
      %p166 = pneg %p99
      %s167 = smul.u32 4, %s18
      %p168 = scmp.lt.s32.totalorder %s17, 0
      %s169 = scalar_select %p168, %s17, 0
      %p170 = scmp.lt.s32.totalorder %s167, 7
      %s171 = scalar_select %p170, %s167, 7
      %s172 = smul.addr %s169, 8
      %s173 = sadd.s32 %s171, %s172
      %s174 = smul.addr %s173, 8
      %s175 = scalar_lea.vmem %s2, %s174
      %s176 = smul.u32 4, %s18
      %p177 = scmp.lt.s32.totalorder %s17, 0
      %s178 = scalar_select %p177, %s17, 0
      %p179 = scmp.lt.s32.totalorder %s176, 7
      %s180 = scalar_select %p179, %s176, 7
      %s181 = smul.addr %s178, 8
      %s182 = sadd.s32 %s180, %s181
      %s183 = smul.addr %s182, 8
      %s184 = scalar_lea.vmem %s0, %s183
      %s185 = smul.u32 4, %s18
      %p186 = scmp.lt.s32.totalorder %s17, 0
      %s187 = scalar_select %p186, %s17, 0
      %s188 = smul.addr %s187, 8
      %s189 = scalar_lea.vmem %s1, %s188
      %s190 = smul.u32 4, %s18
      %p191 = scmp.lt.s32.totalorder %s17, 0
      %s192 = scalar_select %p191, %s17, 0
      %p193 = scmp.lt.s32.totalorder %s190, 7
      %s194 = scalar_select %p193, %s190, 7
      %s195 = smul.addr %s192, 8
      %s196 = sadd.s32 %s194, %s195
      %s197 = smul.addr %s196, 8
      %s198 = scalar_lea.vmem %s2, %s197
      %s199 = smul.u32 4, %s18
      %v200 = vld [vmem:[%s184] sm:$0xff]
      %v201 = vld [vmem:[%s184 + $0x8] sm:$0xff]
      %v202 = vld [vmem:[%s184 + $0x10] sm:$0xff]
      %v203 = vld [vmem:[%s184 + $0x18] sm:$0xff]
      %v204 = vld [vmem:[%s189] sm:$0xff]
      %206 = vset.pattern.permute.xlu0 0
      %207 = vperm.xlu0 %206, %v204
      %v208 = vpop.permute.xlu0 %207
      %v210 = vmul.f32 %v200, %v208
      %v211 = vmul.f32 %v201, %v208
      %v212 = vmul.f32 %v202, %v208
      %v213 = vmul.f32 %v203, %v208
      %214 = vst [vmem:[%s198] sm:$0xff] %v210
      %215 = vst [vmem:[%s198 + $0x8] sm:$0xff] %v211
      %216 = vst [vmem:[%s198 + $0x10] sm:$0xff] %v212
      %217 = vst [vmem:[%s198 + $0x18] sm:$0xff] %v213
      %s218 = smul.u32 4, %s18
      %p219 = scmp.lt.s32.totalorder %s17, 0
      %s220 = scalar_select %p219, %s17, 0
      %p221 = scmp.lt.s32.totalorder %s218, 7
      %s222 = scalar_select %p221, %s218, 7
      %s223 = smul.addr %s220, 8
      %s224 = sadd.s32 %s222, %s223
      %s225 = smul.addr %s224, 8
      %s226 = scalar_lea.vmem %s2, %s225
      // Predicated region
      $region29: #{cse_forward.5} parent=27 // pred_check
        %p227 = pneg %p99
      $region30: #{cse_forward.5} parent=27 // pred_check_branch
        %229 = sbr.rel (%p227) target = $region32
      $region31: #{cse_forward.5} parent=27 // pred_region
        %s230 = smul.u32 4, %s18
      $region32: #{cse_forward.5} parent=27 // pred_fallthru
        _
    $region28: #{cse_forward.5} parent=5 // pred_fallthru
      _
    %p231 = scmp.le.s32.totalorder 2, %s8
    // Predicated region
    $region33: #{cse_forward.5} parent=5 // pred_check
      %p232 = pneg %p231
    $region34: #{cse_forward.5} parent=5 // pred_check_branch
      %234 = sbr.rel (%p232) target = $region36
    $region35: #{cse_forward.5} parent=5 // pred_region
      %s235 = ssub.s32 %s8, 2
      // Predicated region
      $region37: #{cse_forward.5} parent=35 // pred_check
        %p236 = pneg %p105
      $region38: #{cse_forward.5} parent=35 // pred_check_branch
        %238 = sbr.rel (%p236) target = $region40
      $region39: #{cse_forward.5} parent=35 // pred_region
        %s239 = smul.u32 4, %s20
        %p240 = scmp.lt.s32.totalorder %s19, 0
        %s241 = scalar_select %p240, %s19, 0
        %p242 = scmp.lt.s32.totalorder %s239, 7
        %s243 = scalar_select %p242, %s239, 7
        %s244 = smul.addr %s241, 8
        %s245 = sadd.s32 %s243, %s244
        %s246 = smul.addr %s245, 8
        %s247 = scalar_lea.vmem %s2, %s246
      $region40: #{cse_forward.5} parent=35 // pred_fallthru
        _
    $region36: #{cse_forward.5} parent=5 // pred_fallthru
      _
  $region6: #{cse_forward.5} parent=0 // loop_footer
    %s12 = sadd.s32 1, %s8
  $region7: #{cse_forward.5} parent=0 // loop_footer_branch
    %7 = sbr.rel target = $region3
  $region8: #{cse_forward.5} parent=0 // loop_exit
    _

</llo_original>
